<compile_context>
chip_gen: v7x
topology: tpu7x:2x2x1
jax: 0.10.0
libtpu: 0.0.40
codegen_flags: <defaults>
</compile_context>

<pallas_src>
import functools

import jax
import jax.numpy as jnp
from jax.experimental import pallas as pl
from jax.experimental.pallas import tpu as pltpu

IN_F = 34      # 17 keypoints * (x, y)
H1_F = 64
H2_F = 32
OUT_F = 3
OUT_PAD = 8    # lane-padded output width (first OUT_F columns are real)

_SUBLANE = 16  # works for both f32 (8) and bf16 (16) sublane packing


def _round_up(n, m):
    return ((n + m - 1) // m) * m


def _mlp_kernel(x_ref, w1_ref, b1_ref, w2_ref, b2_ref, w3_ref, b3_ref, o_ref):
    # Layer 1: (TB, 34) @ (34, 64) + (1, 64) -> ReLU   (f32 accumulate / epilogue)
    h1 = jnp.dot(x_ref[...], w1_ref[...], preferred_element_type=jnp.float32)
    h1 = jnp.maximum(h1 + b1_ref[...], 0.0)
    # Layer 2: (TB, 64) @ (64, 32) + (1, 32) -> ReLU
    h2 = jnp.dot(h1.astype(w2_ref.dtype), w2_ref[...],
                 preferred_element_type=jnp.float32)
    h2 = jnp.maximum(h2 + b2_ref[...], 0.0)
    # Layer 3: (TB, 32) @ (32, OUT_PAD) + (1, OUT_PAD)  (lane-padded output)
    out = jnp.dot(h2.astype(w3_ref.dtype), w3_ref[...],
                  preferred_element_type=jnp.float32)
    o_ref[...] = (out + b3_ref[...]).astype(o_ref.dtype)


@functools.partial(jax.jit, static_argnames=("block_rows", "compute_dtype"))
def pose_correction_forward(x, params, *, block_rows=1024,
                            compute_dtype=jnp.bfloat16):
    """Fused forward pass. x: (B, 34) float32 -> (B, 3) float32."""
    w1, b1, w2, b2, w3, b3 = params
    B = x.shape[0]

    # Batch tile: big enough to amortize per-step overhead, sublane aligned.
    tb = min(_round_up(block_rows, _SUBLANE), _round_up(max(B, 1), _SUBLANE))
    num_blocks = pl.cdiv(B, tb)
    b_pad = num_blocks * tb

    # Cast the bandwidth-dominant operands to the compute dtype (bf16 default).
    xc = x.astype(compute_dtype)
    if b_pad != B:
        xc = jnp.pad(xc, ((0, b_pad - B), (0, 0)))
    w1c = w1.astype(compute_dtype)
    w2c = w2.astype(compute_dtype)
    # Pad the last layer to a lane-friendly output width with zero columns.
    w3c = jnp.pad(w3.astype(compute_dtype), ((0, 0), (0, OUT_PAD - OUT_F)))
    b3p = jnp.pad(b3, ((0, 0), (0, OUT_PAD - OUT_F)))

    out = pl.pallas_call(
        _mlp_kernel,
        out_shape=jax.ShapeDtypeStruct((b_pad, OUT_PAD), jnp.float32),
        grid=(num_blocks,),
        in_specs=[
            pl.BlockSpec((tb, IN_F), lambda i: (i, 0)),        # x (tiled)
            pl.BlockSpec((IN_F, H1_F), lambda i: (0, 0)),      # w1 (resident)
            pl.BlockSpec((1, H1_F), lambda i: (0, 0)),         # b1
            pl.BlockSpec((H1_F, H2_F), lambda i: (0, 0)),      # w2
            pl.BlockSpec((1, H2_F), lambda i: (0, 0)),         # b2
            pl.BlockSpec((H2_F, OUT_PAD), lambda i: (0, 0)),   # w3 (padded)
            pl.BlockSpec((1, OUT_PAD), lambda i: (0, 0)),      # b3 (padded)
        ],
        out_specs=pl.BlockSpec((tb, OUT_PAD), lambda i: (i, 0)),
        compiler_params=pltpu.CompilerParams(
            dimension_semantics=("parallel",),   # megacore sharding on v7x
        ),
    )(xc, w1c, b1, w2c, b2, w3c, b3p)

    return out[:B, :OUT_F]


def init_params(key):
    """Deterministic parameter init matching nn.Linear fan-in/fan-out.

    fc1: Linear(34, 64), fc2: Linear(64, 32), fc3: Linear(32, 3).
    Weights stored as (in, out); biases as (1, out); all float32.
    """
    ks = jax.random.split(key, 6)

    def linear(kw, kb, fan_in, fan_out):
        bound = 1.0 / jnp.sqrt(jnp.float32(fan_in))
        w = jax.random.uniform(kw, (fan_in, fan_out), jnp.float32, -bound, bound)
        b = jax.random.uniform(kb, (1, fan_out), jnp.float32, -bound, bound)
        return w, b

    w1, b1 = linear(ks[0], ks[1], IN_F, H1_F)
    w2, b2 = linear(ks[2], ks[3], H1_F, H2_F)
    w3, b3 = linear(ks[4], ks[5], H2_F, OUT_F)
    return (w1, b1, w2, b2, w3, b3)


def reference_forward(x, params):
    """Plain-JAX (float32) reference for correctness checking."""
    w1, b1, w2, b2, w3, b3 = params
    h1 = jnp.maximum(x @ w1 + b1, 0.0)
    h2 = jnp.maximum(h1 @ w2 + b2, 0.0)
    return h2 @ w3 + b3


if __name__ == "__main__":
    key = jax.random.PRNGKey(0)
    k_params, k_x1, k_x2 = jax.random.split(key, 3)

    params = init_params(k_params)

    # Case 1: small batch, full-precision path -> tight tolerance.
    x_small = jax.random.normal(k_x1, (8, IN_F), dtype=jnp.float32)
    out_f32 = jax.block_until_ready(
        pose_correction_forward(x_small, params, compute_dtype=jnp.float32))
    ref_small = reference_forward(x_small, params)
    assert out_f32.shape == (8, OUT_F)
    assert jnp.allclose(out_f32, ref_small, atol=1e-5, rtol=1e-5), \
        "f32 kernel mismatch vs reference"

    # Case 2: ragged batch (exercises tail padding) with default bf16 inputs.
    x_ragged = jax.random.normal(k_x2, (37, IN_F), dtype=jnp.float32)
    out_bf16 = jax.block_until_ready(pose_correction_forward(x_ragged, params))
    ref_ragged = reference_forward(x_ragged, params)
    assert out_bf16.shape == (37, OUT_F)
    assert jnp.allclose(out_bf16, ref_ragged, atol=5e-2, rtol=5e-2), \
        "bf16 kernel mismatch vs reference"

    print("KERNEL_OK")
</pallas_src>

<mosaic_0001>
module attributes {stable_mosaic.version = 11 : i64} {
  func.func @_mlp_kernel(%arg0: i32, %arg1: memref<16x34xf32, #tpu.memory_space<vmem>>, %arg2: memref<34x64xf32, #tpu.memory_space<vmem>>, %arg3: memref<1x64xf32, #tpu.memory_space<vmem>>, %arg4: memref<64x32xf32, #tpu.memory_space<vmem>>, %arg5: memref<1x32xf32, #tpu.memory_space<vmem>>, %arg6: memref<32x8xf32, #tpu.memory_space<vmem>>, %arg7: memref<1x8xf32, #tpu.memory_space<vmem>>, %arg8: memref<16x8xf32, #tpu.memory_space<vmem>>) attributes {dimension_semantics = [#tpu.dimension_semantics<parallel>], iteration_bounds = array<i64: 1>, scalar_prefetch = 0 : i64, scratch_operands = 0 : i64, tpu.core_type = #tpu.core_type<tc>, window_params = [{transform_indices = @transform_0, window_bounds = array<i64: 16, 34>}, {pipeline_mode = #tpu.pipeline_mode<synchronous>, transform_indices = @transform_1, window_bounds = array<i64: 34, 64>}, {pipeline_mode = #tpu.pipeline_mode<synchronous>, transform_indices = @transform_2, window_bounds = array<i64: 1, 64>}, {pipeline_mode = #tpu.pipeline_mode<synchronous>, transform_indices = @transform_3, window_bounds = array<i64: 64, 32>}, {pipeline_mode = #tpu.pipeline_mode<synchronous>, transform_indices = @transform_4, window_bounds = array<i64: 1, 32>}, {pipeline_mode = #tpu.pipeline_mode<synchronous>, transform_indices = @transform_5, window_bounds = array<i64: 32, 8>}, {pipeline_mode = #tpu.pipeline_mode<synchronous>, transform_indices = @transform_6, window_bounds = array<i64: 1, 8>}, {transform_indices = @transform_7, window_bounds = array<i64: 16, 8>}]} {
    %c0 = arith.constant 0 : index
    %c0_0 = arith.constant 0 : index
    %0 = vector.load %arg1[%c0, %c0_0] : memref<16x34xf32, #tpu.memory_space<vmem>>, vector<16x34xf32>
    %c0_1 = arith.constant 0 : index
    %c0_2 = arith.constant 0 : index
    %1 = vector.load %arg2[%c0_1, %c0_2] : memref<34x64xf32, #tpu.memory_space<vmem>>, vector<34x64xf32>
    %cst = arith.constant dense<0.000000e+00> : vector<16x64xf32>
    %2 = tpu.matmul %0, %1, %cst {dimension_numbers = #tpu.dot_dimension_numbers<[1], [0], [0], [1], [0, 0, 1, 1], [], []>} : vector<16x34xf32>, vector<34x64xf32>, vector<16x64xf32> -> vector<16x64xf32>
    %c0_3 = arith.constant 0 : index
    %c0_4 = arith.constant 0 : index
    %3 = vector.load %arg3[%c0_3, %c0_4] : memref<1x64xf32, #tpu.memory_space<vmem>>, vector<1x64xf32>
    %4 = vector.broadcast %3 : vector<1x64xf32> to vector<16x64xf32>
    %5 = arith.addf %2, %4 : vector<16x64xf32>
    %cst_5 = arith.constant 0.000000e+00 : f32
    %6 = vector.broadcast %cst_5 : f32 to vector<16x64xf32>
    %7 = arith.maximumf %5, %6 : vector<16x64xf32>
    %c0_6 = arith.constant 0 : index
    %c0_7 = arith.constant 0 : index
    %8 = vector.load %arg4[%c0_6, %c0_7] : memref<64x32xf32, #tpu.memory_space<vmem>>, vector<64x32xf32>
    %cst_8 = arith.constant dense<0.000000e+00> : vector<16x32xf32>
    %9 = tpu.matmul %7, %8, %cst_8 {dimension_numbers = #tpu.dot_dimension_numbers<[1], [0], [0], [1], [0, 0, 1, 1], [], []>} : vector<16x64xf32>, vector<64x32xf32>, vector<16x32xf32> -> vector<16x32xf32>
    %c0_9 = arith.constant 0 : index
    %c0_10 = arith.constant 0 : index
    %10 = vector.load %arg5[%c0_9, %c0_10] : memref<1x32xf32, #tpu.memory_space<vmem>>, vector<1x32xf32>
    %11 = vector.broadcast %10 : vector<1x32xf32> to vector<16x32xf32>
    %12 = arith.addf %9, %11 : vector<16x32xf32>
    %cst_11 = arith.constant 0.000000e+00 : f32
    %13 = vector.broadcast %cst_11 : f32 to vector<16x32xf32>
    %14 = arith.maximumf %12, %13 : vector<16x32xf32>
    %c0_12 = arith.constant 0 : index
    %c0_13 = arith.constant 0 : index
    %15 = vector.load %arg6[%c0_12, %c0_13] : memref<32x8xf32, #tpu.memory_space<vmem>>, vector<32x8xf32>
    %cst_14 = arith.constant dense<0.000000e+00> : vector<16x8xf32>
    %16 = tpu.matmul %14, %15, %cst_14 {dimension_numbers = #tpu.dot_dimension_numbers<[1], [0], [0], [1], [0, 0, 1, 1], [], []>} : vector<16x32xf32>, vector<32x8xf32>, vector<16x8xf32> -> vector<16x8xf32>
    %c0_15 = arith.constant 0 : index
    %c0_16 = arith.constant 0 : index
    %17 = vector.load %arg7[%c0_15, %c0_16] : memref<1x8xf32, #tpu.memory_space<vmem>>, vector<1x8xf32>
    %18 = vector.broadcast %17 : vector<1x8xf32> to vector<16x8xf32>
    %19 = arith.addf %16, %18 : vector<16x8xf32>
    %c0_17 = arith.constant 0 : index
    %c0_18 = arith.constant 0 : index
    %20 = vector.load %arg8[%c0_17, %c0_18] : memref<16x8xf32, #tpu.memory_space<vmem>>, vector<16x8xf32>
    tpu.vector_store %arg8[%c0_17, %c0_18], %19 {strides = array<i32>} : memref<16x8xf32, #tpu.memory_space<vmem>>, vector<16x8xf32>,
    return
  }
  func.func @transform_0(%arg0: i32) -> (i32, i32) {
    %c0_i32 = arith.constant 0 : i32
    %c0_i32_0 = arith.constant 0 : i32
    return %arg0, %c0_i32 : i32, i32
  }
  func.func @transform_1(%arg0: i32) -> (i32, i32) {
    %c0_i32 = arith.constant 0 : i32
    %c0_i32_0 = arith.constant 0 : i32
    %c0_i32_1 = arith.constant 0 : i32
    return %c0_i32, %c0_i32_0 : i32, i32
  }
  func.func @transform_2(%arg0: i32) -> (i32, i32) {
    %c0_i32 = arith.constant 0 : i32
    %c0_i32_0 = arith.constant 0 : i32
    %c0_i32_1 = arith.constant 0 : i32
    return %c0_i32, %c0_i32_0 : i32, i32
  }
  func.func @transform_3(%arg0: i32) -> (i32, i32) {
    %c0_i32 = arith.constant 0 : i32
    %c0_i32_0 = arith.constant 0 : i32
    %c0_i32_1 = arith.constant 0 : i32
    return %c0_i32, %c0_i32_0 : i32, i32
  }
  func.func @transform_4(%arg0: i32) -> (i32, i32) {
    %c0_i32 = arith.constant 0 : i32
    %c0_i32_0 = arith.constant 0 : i32
    %c0_i32_1 = arith.constant 0 : i32
    return %c0_i32, %c0_i32_0 : i32, i32
  }
  func.func @transform_5(%arg0: i32) -> (i32, i32) {
    %c0_i32 = arith.constant 0 : i32
    %c0_i32_0 = arith.constant 0 : i32
    %c0_i32_1 = arith.constant 0 : i32
    return %c0_i32, %c0_i32_0 : i32, i32
  }
  func.func @transform_6(%arg0: i32) -> (i32, i32) {
    %c0_i32 = arith.constant 0 : i32
    %c0_i32_0 = arith.constant 0 : i32
    %c0_i32_1 = arith.constant 0 : i32
    return %c0_i32, %c0_i32_0 : i32, i32
  }
  func.func @transform_7(%arg0: i32) -> (i32, i32) {
    %c0_i32 = arith.constant 0 : i32
    %c0_i32_0 = arith.constant 0 : i32
    return %arg0, %c0_i32 : i32, i32
  }
}

</mosaic_0001>

<llo_original>
// kernel: pose_correction_forward.1
$region0: #{pose_correction_forward.1}
  #allocation0 [shape = 'u32[]', space=smem, size = 0x4, offset = 0x4, fixed_abs, tag = 'smem constant byte address 0x4 - core index']
  #allocation1 [shape = 'u32[144,128]{1,0:T(1,128)}', space=vmem, size = 0x12000, scoped, tag = 'internal scratch']
  %s0 = inlined_call_operand.vmem [shape: f32[16,34], index: 0, kind: input, shape index: {}]
  %s1 = inlined_call_operand.vmem [shape: f32[34,64], index: 1, kind: input, shape index: {}]
  %s2 = inlined_call_operand.vmem [shape: f32[1,64], index: 2, kind: input, shape index: {}]
  %s3 = inlined_call_operand.vmem [shape: f32[64,32], index: 3, kind: input, shape index: {}]
  %s4 = inlined_call_operand.vmem [shape: f32[1,32], index: 4, kind: input, shape index: {}]
  %s5 = inlined_call_operand.vmem [shape: f32[32,8], index: 5, kind: input, shape index: {}]
  %s6 = inlined_call_operand.vmem [shape: f32[1,8], index: 6, kind: input, shape index: {}]
  %s7 = inlined_call_operand.vmem [shape: f32[16,8], index: 7, kind: output, shape index: {}]
  %s8 = sld [smem:[#allocation0]]
  $region38: #{pose_correction_forward.1} parent=0
    _
  %s10 = ssub.s32 1, %s8
  %s11 = scalar_select 0, %s10, %s8
  // Predicated region
  $region2: #{pose_correction_forward.1} parent=0 // pred_check
    _
  $region3: #{pose_correction_forward.1} parent=0 // pred_check_branch
    %13 = sbr.rel (0) target = $region5
  $region4: #{pose_correction_forward.1} parent=0 // pred_region
    _
  $region5: #{pose_correction_forward.1} parent=0 // pred_fallthru
    _
  // Predicated region
  $region6: #{pose_correction_forward.1} parent=0 // pred_check
    _
  $region7: #{pose_correction_forward.1} parent=0 // pred_check_branch
    %15 = sbr.rel (0) target = $region9
  $region8: #{pose_correction_forward.1} parent=0 // pred_region
    _
  $region9: #{pose_correction_forward.1} parent=0 // pred_fallthru
    _
  // Predicated region
  $region10: #{pose_correction_forward.1} parent=0 // pred_check
    _
  $region11: #{pose_correction_forward.1} parent=0 // pred_check_branch
    %17 = sbr.rel (0) target = $region13
  $region12: #{pose_correction_forward.1} parent=0 // pred_region
    _
  $region13: #{pose_correction_forward.1} parent=0 // pred_fallthru
    _
  // Predicated region
  $region14: #{pose_correction_forward.1} parent=0 // pred_check
    _
  $region15: #{pose_correction_forward.1} parent=0 // pred_check_branch
    %19 = sbr.rel (0) target = $region17
  $region16: #{pose_correction_forward.1} parent=0 // pred_region
    _
  $region17: #{pose_correction_forward.1} parent=0 // pred_fallthru
    _
  // Predicated region
  $region18: #{pose_correction_forward.1} parent=0 // pred_check
    _
  $region19: #{pose_correction_forward.1} parent=0 // pred_check_branch
    %21 = sbr.rel (0) target = $region21
  $region20: #{pose_correction_forward.1} parent=0 // pred_region
    _
  $region21: #{pose_correction_forward.1} parent=0 // pred_fallthru
    _
  // Predicated region
  $region22: #{pose_correction_forward.1} parent=0 // pred_check
    _
  $region23: #{pose_correction_forward.1} parent=0 // pred_check_branch
    %23 = sbr.rel (0) target = $region25
  $region24: #{pose_correction_forward.1} parent=0 // pred_region
    _
  $region25: #{pose_correction_forward.1} parent=0 // pred_fallthru
    _
  // Predicated region
  $region26: #{pose_correction_forward.1} parent=0 // pred_check
    _
  $region27: #{pose_correction_forward.1} parent=0 // pred_check_branch
    %25 = sbr.rel (0) target = $region29
  $region28: #{pose_correction_forward.1} parent=0 // pred_region
    _
  $region29: #{pose_correction_forward.1} parent=0 // pred_fallthru
    _
  %v26 = vld [vmem:[%s0] sm:$0xff]
  %v27 = vld [vmem:[%s0 + $0x8] sm:$0xff]
  %v28 = vld [vmem:[%s1] sm:$0xff]
  %v29 = vld [vmem:[%s1 + $0x8] sm:$0xff]
  %v30 = vld [vmem:[%s1 + $0x10] sm:$0xff]
  %v31 = vld [vmem:[%s1 + $0x18] sm:$0xff]
  %v32 = vld [vmem:[%s1 + $0x20] sm:$0x3]
  %v33 = vld [vmem:[%s2] sm:$0x1]
  %v35 = vlaneseq
  %v36 = vshrl.u32 %v35, 7
  %v37 = vsub.s32 0, %v36
  %v38 = vrot.slane %v33, %v37
  %vm40 = vcmask 277504
  %v42 = vsel %vm40, %v26, 0
  %v45 = vsel %vm40, %v27, 0
  %vm47 = vcmask 1041408
  %v49 = vsel %vm47, %v32, 0
  %51 = vmatprep.subr.mxu0 0.0
  %52 = vmatpush1.msra.mxu0 %v28
  %53 = vmatprep.subr.mxu0 0.0
  %54 = vmatpush1.msra.mxu0 %v29
  %55 = vmatprep.subr.mxu0 0.0
  %56 = vmatpush1.msra.mxu0 %v30
  %57 = vmatprep.subr.mxu0 0.0
  %58 = vmatpush1.msra.mxu0 %v31
  %59 = vmatprep.subr.mxu0 0.0
  %60 = vmatpush1.msra.mxu0 %v49
  %61 = vmatprep.subr.mxu0 0.0
  %62 = vmatpush1.msra.mxu0 0.0
  %63 = vmatprep.subr.mxu0 0.0
  %64 = vmatpush1.msra.mxu0 0.0
  %65 = vmatprep.subr.mxu0 0.0
  %66 = vmatpush1.msra.mxu0 0.0
  %67 = vmatprep.subr.mxu0 0.0
  %68 = vmatpush1.msra.mxu0 0.0
  %69 = vmatprep.subr.mxu0 0.0
  %70 = vmatpush1.msra.mxu0 0.0
  %71 = vmatprep.subr.mxu0 0.0
  %72 = vmatpush1.msra.mxu0 0.0
  %73 = vmatprep.subr.mxu0 0.0
  %74 = vmatpush1.msra.mxu0 0.0
  %75 = vmatprep.subr.mxu0 0.0
  %76 = vmatpush1.msra.mxu0 0.0
  %77 = vmatprep.subr.mxu0 0.0
  %78 = vmatpush1.msra.mxu0 0.0
  %79 = vmatprep.subr.mxu0 0.0
  %80 = vmatpush1.msra.mxu0 0.0
  %81 = vmatprep.subr.mxu0 0.0
  %82 = vmatpush1.msra.mxu0 0.0
  %83 = vmatprep.subr.mxu0 0.0
  %84 = vmatpush1.msra.mxu0 0.0
  %85 = vmatprep.subr.mxu0 0.0
  %86 = vmatpush1.msra.mxu0 0.0
  %87 = vmatprep.subr.mxu0 0.0
  %88 = vmatpush1.msra.mxu0 0.0
  %89 = vmatprep.subr.mxu0 0.0
  %90 = vmatpush1.msra.mxu0 0.0
  %91 = vmatprep.subr.mxu0 0.0
  %92 = vmatpush1.msra.mxu0 0.0
  %93 = vmatprep.subr.mxu0 0.0
  %94 = vmatpush1.msra.mxu0 0.0
  %95 = vmatprep.subr.mxu0 0.0
  %96 = vmatpush1.msra.mxu0 0.0
  %97 = vmatprep.subr.mxu0 0.0
  %98 = vmatpush1.msra.mxu0 0.0
  %99 = vmatprep.subr.mxu0 0.0
  %100 = vmatpush1.msra.mxu0 0.0
  %101 = vmatprep.subr.mxu0 0.0
  %102 = vmatpush1.msra.mxu0 0.0
  %103 = vmatprep.subr.mxu0 0.0
  %104 = vmatpush1.msra.mxu0 0.0
  %105 = vmatprep.subr.mxu0 0.0
  %106 = vmatpush1.msra.mxu0 0.0
  %107 = vmatprep.subr.mxu0 0.0
  %108 = vmatpush1.msra.mxu0 0.0
  %109 = vmatprep.subr.mxu0 0.0
  %110 = vmatpush1.msra.mxu0 0.0
  %111 = vmatprep.subr.mxu0 0.0
  %112 = vmatpush1.msra.mxu0 0.0
  %113 = vmatprep.subr.mxu0 0.0
  %114 = vmatpush1.msra.mxu0 0.0
  %115 = vmatprep.mubr.f32.mxu0 0.0
  %116 = vmatmul.mubr.f32.gmra.mrb[0].mxu0 %v42
  %v117 = vpop.f32.mrb[0].mxu0
  %v118 = vadd.f32 %v38, %v117
  %v119 = vpop.f32.mrb[0].mxu0
  %120 = vmatprep.mubr.f32.mxu0 0.0
  %121 = vmatmul.mubr.f32.gmra.mrb[0].mxu0 %v45
  %v122 = vpop.f32.mrb[0].mxu0
  %v123 = vadd.f32 %v38, %v122
  %v124 = vpop.f32.mrb[0].mxu0
  %125 = vdwg.mxu0
  %v126 = vmax.f32 %v118, 0.0
  %v127 = vmax.f32 %v123, 0.0
  %v128 = vld [vmem:[%s3] sm:$0xff]
  %v129 = vld [vmem:[%s3 + $0x8] sm:$0xff]
  %v130 = vld [vmem:[%s3 + $0x10] sm:$0xff]
  %v131 = vld [vmem:[%s3 + $0x18] sm:$0xff]
  %v132 = vld [vmem:[%s3 + $0x20] sm:$0xff]
  %v133 = vld [vmem:[%s3 + $0x28] sm:$0xff]
  %v134 = vld [vmem:[%s3 + $0x30] sm:$0xff]
  %v135 = vld [vmem:[%s3 + $0x38] sm:$0xff]
  %v136 = vld [vmem:[%s4] sm:$0x1]
  %v138 = vlaneseq
  %v139 = vshrl.u32 %v138, 7
  %v140 = vsub.s32 0, %v139
  %v141 = vrot.slane %v136, %v140
  %vm143 = vcmask 523264
  %v145 = vsel %vm143, %v126, 0
  %v148 = vsel %vm143, %v127, 0
  %150 = vmatprep.subr.mxu0 0.0
  %151 = vmatpush1.msra.mxu0 %v128
  %152 = vmatprep.subr.mxu0 0.0
  %153 = vmatpush1.msra.mxu0 %v129
  %154 = vmatprep.subr.mxu0 0.0
  %155 = vmatpush1.msra.mxu0 %v130
  %156 = vmatprep.subr.mxu0 0.0
  %157 = vmatpush1.msra.mxu0 %v131
  %158 = vmatprep.subr.mxu0 0.0
  %159 = vmatpush1.msra.mxu0 %v132
  %160 = vmatprep.subr.mxu0 0.0
  %161 = vmatpush1.msra.mxu0 %v133
  %162 = vmatprep.subr.mxu0 0.0
  %163 = vmatpush1.msra.mxu0 %v134
  %164 = vmatprep.subr.mxu0 0.0
  %165 = vmatpush1.msra.mxu0 %v135
  %166 = vmatprep.subr.mxu0 0.0
  %167 = vmatpush1.msra.mxu0 0.0
  %168 = vmatprep.subr.mxu0 0.0
  %169 = vmatpush1.msra.mxu0 0.0
  %170 = vmatprep.subr.mxu0 0.0
  %171 = vmatpush1.msra.mxu0 0.0
  %172 = vmatprep.subr.mxu0 0.0
  %173 = vmatpush1.msra.mxu0 0.0
  %174 = vmatprep.subr.mxu0 0.0
  %175 = vmatpush1.msra.mxu0 0.0
  %176 = vmatprep.subr.mxu0 0.0
  %177 = vmatpush1.msra.mxu0 0.0
  %178 = vmatprep.subr.mxu0 0.0
  %179 = vmatpush1.msra.mxu0 0.0
  %180 = vmatprep.subr.mxu0 0.0
  %181 = vmatpush1.msra.mxu0 0.0
  %182 = vmatprep.subr.mxu0 0.0
  %183 = vmatpush1.msra.mxu0 0.0
  %184 = vmatprep.subr.mxu0 0.0
  %185 = vmatpush1.msra.mxu0 0.0
  %186 = vmatprep.subr.mxu0 0.0
  %187 = vmatpush1.msra.mxu0 0.0
  %188 = vmatprep.subr.mxu0 0.0
  %189 = vmatpush1.msra.mxu0 0.0
  %190 = vmatprep.subr.mxu0 0.0
  %191 = vmatpush1.msra.mxu0 0.0
  %192 = vmatprep.subr.mxu0 0.0
  %193 = vmatpush1.msra.mxu0 0.0
  %194 = vmatprep.subr.mxu0 0.0
  %195 = vmatpush1.msra.mxu0 0.0
  %196 = vmatprep.subr.mxu0 0.0
  %197 = vmatpush1.msra.mxu0 0.0
  %198 = vmatprep.subr.mxu0 0.0
  %199 = vmatpush1.msra.mxu0 0.0
  %200 = vmatprep.subr.mxu0 0.0
  %201 = vmatpush1.msra.mxu0 0.0
  %202 = vmatprep.subr.mxu0 0.0
  %203 = vmatpush1.msra.mxu0 0.0
  %204 = vmatprep.subr.mxu0 0.0
  %205 = vmatpush1.msra.mxu0 0.0
  %206 = vmatprep.subr.mxu0 0.0
  %207 = vmatpush1.msra.mxu0 0.0
  %208 = vmatprep.subr.mxu0 0.0
  %209 = vmatpush1.msra.mxu0 0.0
  %210 = vmatprep.subr.mxu0 0.0
  %211 = vmatpush1.msra.mxu0 0.0
  %212 = vmatprep.subr.mxu0 0.0
  %213 = vmatpush1.msra.mxu0 0.0
  %214 = vmatprep.mubr.f32.mxu0 0.0
  %215 = vmatmul.mubr.f32.gmra.mrb[0].mxu0 %v145
  %v216 = vpop.f32.mrb[0].mxu0
  %v217 = vadd.f32 %v141, %v216
  %v218 = vpop.f32.mrb[0].mxu0
  %219 = vmatprep.mubr.f32.mxu0 0.0
  %220 = vmatmul.mubr.f32.gmra.mrb[0].mxu0 %v148
  %v221 = vpop.f32.mrb[0].mxu0
  %v222 = vadd.f32 %v141, %v221
  %v223 = vpop.f32.mrb[0].mxu0
  %224 = vdwg.mxu0
  %v225 = vmax.f32 %v217, 0.0
  %v226 = vmax.f32 %v222, 0.0
  %v227 = vld [vmem:[%s5] sm:$0xff]
  %v228 = vld [vmem:[%s5 + $0x8] sm:$0xff]
  %v229 = vld [vmem:[%s5 + $0x10] sm:$0xff]
  %v230 = vld [vmem:[%s5 + $0x18] sm:$0xff]
  %v231 = vld [vmem:[%s6] sm:$0x1]
  %v233 = vlaneseq
  %v234 = vshrl.u32 %v233, 7
  %v235 = vsub.s32 0, %v234
  %v236 = vrot.slane %v231, %v235
  %vm238 = vcmask 261120
  %v240 = vsel %vm238, %v225, 0
  %v243 = vsel %vm238, %v226, 0
  %245 = vmatprep.subr.mxu0 0.0
  %246 = vmatpush1.msra.mxu0 %v227
  %247 = vmatprep.subr.mxu0 0.0
  %248 = vmatpush1.msra.mxu0 %v228
  %249 = vmatprep.subr.mxu0 0.0
  %250 = vmatpush1.msra.mxu0 %v229
  %251 = vmatprep.subr.mxu0 0.0
  %252 = vmatpush1.msra.mxu0 %v230
  %253 = vmatprep.subr.mxu0 0.0
  %254 = vmatpush1.msra.mxu0 0.0
  %255 = vmatprep.subr.mxu0 0.0
  %256 = vmatpush1.msra.mxu0 0.0
  %257 = vmatprep.subr.mxu0 0.0
  %258 = vmatpush1.msra.mxu0 0.0
  %259 = vmatprep.subr.mxu0 0.0
  %260 = vmatpush1.msra.mxu0 0.0
  %261 = vmatprep.subr.mxu0 0.0
  %262 = vmatpush1.msra.mxu0 0.0
  %263 = vmatprep.subr.mxu0 0.0
  %264 = vmatpush1.msra.mxu0 0.0
  %265 = vmatprep.subr.mxu0 0.0
  %266 = vmatpush1.msra.mxu0 0.0
  %267 = vmatprep.subr.mxu0 0.0
  %268 = vmatpush1.msra.mxu0 0.0
  %269 = vmatprep.subr.mxu0 0.0
  %270 = vmatpush1.msra.mxu0 0.0
  %271 = vmatprep.subr.mxu0 0.0
  %272 = vmatpush1.msra.mxu0 0.0
  %273 = vmatprep.subr.mxu0 0.0
  %274 = vmatpush1.msra.mxu0 0.0
  %275 = vmatprep.subr.mxu0 0.0
  %276 = vmatpush1.msra.mxu0 0.0
  %277 = vmatprep.subr.mxu0 0.0
  %278 = vmatpush1.msra.mxu0 0.0
  %279 = vmatprep.subr.mxu0 0.0
  %280 = vmatpush1.msra.mxu0 0.0
  %281 = vmatprep.subr.mxu0 0.0
  %282 = vmatpush1.msra.mxu0 0.0
  %283 = vmatprep.subr.mxu0 0.0
  %284 = vmatpush1.msra.mxu0 0.0
  %285 = vmatprep.subr.mxu0 0.0
  %286 = vmatpush1.msra.mxu0 0.0
  %287 = vmatprep.subr.mxu0 0.0
  %288 = vmatpush1.msra.mxu0 0.0
  %289 = vmatprep.subr.mxu0 0.0
  %290 = vmatpush1.msra.mxu0 0.0
  %291 = vmatprep.subr.mxu0 0.0
  %292 = vmatpush1.msra.mxu0 0.0
  %293 = vmatprep.subr.mxu0 0.0
  %294 = vmatpush1.msra.mxu0 0.0
  %295 = vmatprep.subr.mxu0 0.0
  %296 = vmatpush1.msra.mxu0 0.0
  %297 = vmatprep.subr.mxu0 0.0
  %298 = vmatpush1.msra.mxu0 0.0
  %299 = vmatprep.subr.mxu0 0.0
  %300 = vmatpush1.msra.mxu0 0.0
  %301 = vmatprep.subr.mxu0 0.0
  %302 = vmatpush1.msra.mxu0 0.0
  %303 = vmatprep.subr.mxu0 0.0
  %304 = vmatpush1.msra.mxu0 0.0
  %305 = vmatprep.subr.mxu0 0.0
  %306 = vmatpush1.msra.mxu0 0.0
  %307 = vmatprep.subr.mxu0 0.0
  %308 = vmatpush1.msra.mxu0 0.0
  %309 = vmatprep.mubr.f32.mxu0 0.0
  %310 = vmatmul.mubr.f32.gmra.mrb[0].mxu0 %v240
  %v311 = vpop.f32.mrb[0].mxu0
  %v312 = vadd.f32 %v236, %v311
  %v313 = vpop.f32.mrb[0].mxu0
  %314 = vmatprep.mubr.f32.mxu0 0.0
  %315 = vmatmul.mubr.f32.gmra.mrb[0].mxu0 %v243
  %v316 = vpop.f32.mrb[0].mxu0
  %v317 = vadd.f32 %v236, %v316
  %v318 = vpop.f32.mrb[0].mxu0
  %319 = vdwg.mxu0
  %vm320 = vcmask 64512
  %321 = vst.msk [vmem:[%s7] sm:$0xff] %vm320, %v312
  %322 = vst.msk [vmem:[%s7 + $0x8] sm:$0xff] %vm320, %v317
  // Predicated region
  $region30: #{pose_correction_forward.1} parent=0 // pred_check
    _
  $region31: #{pose_correction_forward.1} parent=0 // pred_check_branch
    %324 = sbr.rel (0) target = $region33
  $region32: #{pose_correction_forward.1} parent=0 // pred_region
    _
  $region33: #{pose_correction_forward.1} parent=0 // pred_fallthru
    _
  // Predicated region
  $region34: #{pose_correction_forward.1} parent=0 // pred_check
    _
  $region35: #{pose_correction_forward.1} parent=0 // pred_check_branch
    %326 = sbr.rel (0) target = $region37
  $region36: #{pose_correction_forward.1} parent=0 // pred_region
    _
  $region37: #{pose_correction_forward.1} parent=0 // pred_fallthru
    _

</llo_original>
